<compile_context>
chip_gen: v6e
topology: v6e:2x2x1
jax: 0.10.0
libtpu: 0.0.40
codegen_flags: <defaults>
</compile_context>

<pallas_src>
import functools

import jax
import jax.numpy as jnp
from jax import lax
from jax.experimental import pallas as pl
from jax.experimental.pallas import tpu as pltpu

EPS = 1e-5
LANE = 128
_VMEM_LIMIT = 32 * 1024 * 1024


def _round_up(x, m):
    return (x + m - 1) // m * m


def _compiler_params():
    return pltpu.CompilerParams(dimension_semantics=("parallel",),
                                vmem_limit_bytes=_VMEM_LIMIT)


# ---------------------------------------------------------------------------
# Pallas kernels
# ---------------------------------------------------------------------------
def _matmul_stats_kernel(p_ref, w_ref, y_ref, stats_ref):
    """[TM,K]x[K,C] bf16 matmul (f32 acc) + per-tile channel sum / sum-of-squares."""
    y = jnp.dot(p_ref[...], w_ref[...], preferred_element_type=jnp.float32)
    y_ref[...] = y
    stats_ref[0, 0:1, :] = jnp.sum(y, axis=0, keepdims=True)
    stats_ref[0, 1:2, :] = jnp.sum(y * y, axis=0, keepdims=True)


def _bn_act_kernel(y_ref, scale_ref, bias_ref, o_ref):
    """BN (pre-folded scale/bias) + ReLU."""
    o_ref[...] = jnp.maximum(
        y_ref[...] * scale_ref[...] + bias_ref[...], 0.0).astype(o_ref.dtype)


def _bn_add_act_kernel(y_ref, sc_ref, scale_ref, bias_ref, o_ref):
    """BN + identity shortcut + ReLU."""
    o_ref[...] = jnp.maximum(
        y_ref[...] * scale_ref[...] + bias_ref[...] + sc_ref[...],
        0.0).astype(o_ref.dtype)


def _bn_convsc_add_act_kernel(y_ref, xsc_ref, wsc_ref, scale_ref, bias_ref, o_ref):
    """BN + fused 1x1-conv shortcut matmul + ReLU."""
    sc = jnp.dot(xsc_ref[...], wsc_ref[...], preferred_element_type=jnp.float32)
    o_ref[...] = jnp.maximum(
        y_ref[...] * scale_ref[...] + bias_ref[...] + sc, 0.0).astype(o_ref.dtype)


# ---------------------------------------------------------------------------
# pallas_call wrappers (tiling / specs)
# ---------------------------------------------------------------------------
def _tiling(m, tile_m):
    """Balanced M tiling: T tiles of TM rows (TM % 8 == 0), Mpad = T*TM >= M."""
    t = max(1, -(-m // tile_m))
    tm = _round_up(-(-m // t), 8)
    return tm, t, tm * t


def _conv_matmul_stats(patches, weights, tile_m):
    """Tiled conv-as-matmul.  patches [M,K], weights [K,Cout] (any float dtype).

    Returns (y_raw [Mpad,Cpad] f32, stats [2,Cpad] f32 = (sum, sum_sq) over the
    true M rows, tiling tuple (m, mpad, tm, t, cpad))."""
    m, k = patches.shape
    _, cout = weights.shape
    kp = _round_up(k, LANE)
    cp = _round_up(cout, LANE)
    tm, t, mp = _tiling(m, tile_m)

    p = jnp.pad(patches, ((0, mp - m), (0, kp - k))).astype(jnp.bfloat16)
    w = jnp.pad(weights, ((0, kp - k), (0, cp - cout))).astype(jnp.bfloat16)

    cost = pl.CostEstimate(
        flops=2 * mp * kp * cp,
        transcendentals=0,
        bytes_accessed=int(mp * kp * 2 + kp * cp * 2 + mp * cp * 4 + t * 2 * cp * 4))

    y, part = pl.pallas_call(
        _matmul_stats_kernel,
        grid=(t,),
        in_specs=[pl.BlockSpec((tm, kp), lambda i: (i, 0)),
                  pl.BlockSpec((kp, cp), lambda i: (0, 0))],
        out_specs=[pl.BlockSpec((tm, cp), lambda i: (i, 0)),
                   pl.BlockSpec((1, 2, cp), lambda i: (i, 0, 0))],
        out_shape=[jax.ShapeDtypeStruct((mp, cp), jnp.float32),
                   jax.ShapeDtypeStruct((t, 2, cp), jnp.float32)],
        compiler_params=_compiler_params(),
        cost_estimate=cost,
    )(p, w)

    stats = jnp.sum(part, axis=0)          # [2, Cpad], full-M reduction (f32)
    return y, stats, (m, mp, tm, t, cp)


def _bn_scale_bias(stats, count, gamma, beta, cp):
    """Fold batch mean/var (biased) + gamma/beta into per-channel scale/bias."""
    g = jnp.pad(gamma.astype(jnp.float32), (0, cp - gamma.shape[0]))
    b = jnp.pad(beta.astype(jnp.float32), (0, cp - beta.shape[0]))
    mean = stats[0] / count
    var = jnp.maximum(stats[1] / count - mean * mean, 0.0)
    scale = g * lax.rsqrt(var + EPS)
    bias = b - mean * scale
    return scale.reshape(1, cp), bias.reshape(1, cp)


def _bn_act(y, scale, bias, tiling, out_dtype):
    _, mp, tm, t, cp = tiling
    return pl.pallas_call(
        _bn_act_kernel,
        grid=(t,),
        in_specs=[pl.BlockSpec((tm, cp), lambda i: (i, 0)),
                  pl.BlockSpec((1, cp), lambda i: (0, 0)),
                  pl.BlockSpec((1, cp), lambda i: (0, 0))],
        out_specs=pl.BlockSpec((tm, cp), lambda i: (i, 0)),
        out_shape=jax.ShapeDtypeStruct((mp, cp), out_dtype),
        compiler_params=_compiler_params(),
        cost_estimate=pl.CostEstimate(flops=3 * mp * cp, transcendentals=0,
                                      bytes_accessed=int(2 * mp * cp * 4)),
    )(y, scale, bias)


def _bn_add_act(y, shortcut, scale, bias, tiling):
    _, mp, tm, t, cp = tiling
    return pl.pallas_call(
        _bn_add_act_kernel,
        grid=(t,),
        in_specs=[pl.BlockSpec((tm, cp), lambda i: (i, 0)),
                  pl.BlockSpec((tm, cp), lambda i: (i, 0)),
                  pl.BlockSpec((1, cp), lambda i: (0, 0)),
                  pl.BlockSpec((1, cp), lambda i: (0, 0))],
        out_specs=pl.BlockSpec((tm, cp), lambda i: (i, 0)),
        out_shape=jax.ShapeDtypeStruct((mp, cp), jnp.float32),
        compiler_params=_compiler_params(),
        cost_estimate=pl.CostEstimate(flops=4 * mp * cp, transcendentals=0,
                                      bytes_accessed=int(3 * mp * cp * 4)),
    )(y, shortcut, scale, bias)


def _bn_convsc_add_act(y, x_sc, w_sc, scale, bias, tiling):
    _, mp, tm, t, cp = tiling
    kin = x_sc.shape[1]
    return pl.pallas_call(
        _bn_convsc_add_act_kernel,
        grid=(t,),
        in_specs=[pl.BlockSpec((tm, cp), lambda i: (i, 0)),
                  pl.BlockSpec((tm, kin), lambda i: (i, 0)),
                  pl.BlockSpec((kin, cp), lambda i: (0, 0)),
                  pl.BlockSpec((1, cp), lambda i: (0, 0)),
                  pl.BlockSpec((1, cp), lambda i: (0, 0))],
        out_specs=pl.BlockSpec((tm, cp), lambda i: (i, 0)),
        out_shape=jax.ShapeDtypeStruct((mp, cp), jnp.float32),
        compiler_params=_compiler_params(),
        cost_estimate=pl.CostEstimate(
            flops=2 * mp * kin * cp + 4 * mp * cp, transcendentals=0,
            bytes_accessed=int(mp * cp * 8 + mp * kin * 2 + kin * cp * 2)),
    )(y, x_sc, w_sc, scale, bias)


# ---------------------------------------------------------------------------
# JAX glue (layout / patch extraction only)
# ---------------------------------------------------------------------------
def _im2col_3x3(x_nhwc, stride):
    """Extract 3x3 patches (padding=1) as a [M, 9*C] matrix (K = tap*C + c)."""
    n, h, w, c = x_nhwc.shape
    h_out = (h + 2 - 3) // stride + 1
    w_out = (w + 2 - 3) // stride + 1
    xp = jnp.pad(x_nhwc, ((0, 0), (1, 1), (1, 1), (0, 0)))
    cols = []
    for kh in range(3):
        for kw in range(3):
            cols.append(xp[:, kh:kh + stride * (h_out - 1) + 1:stride,
                              kw:kw + stride * (w_out - 1) + 1:stride, :])
    p = jnp.stack(cols, axis=3)                      # [N, Ho, Wo, 9, C]
    return p.reshape(n * h_out * w_out, 9 * c), h_out, w_out


@functools.partial(jax.jit, static_argnames=("stride", "tile_m"))
def basicneck_forward(x_nchw, params, stride=1, tile_m=512):
    x = jnp.transpose(x_nchw, (0, 2, 3, 1)).astype(jnp.float32)    # NCHW -> NHWC
    n, h, w, c_in = x.shape
    w1 = params["w1"]            # [3, 3, Cin,  Cmid]
    w2 = params["w2"]            # [3, 3, Cmid, Cout]
    c_mid, c_out = w1.shape[-1], w2.shape[-1]

    # ---- conv1 (tiled matmul + batch stats), then BN1 + ReLU ----------------
    p1, ho, wo = _im2col_3x3(x, stride)
    m = n * ho * wo
    y1_raw, stats1, til1 = _conv_matmul_stats(p1, w1.reshape(9 * c_in, c_mid), tile_m)
    cp1 = til1[-1]
    s1, b1 = _bn_scale_bias(stats1, m, params["gamma1"], params["beta1"], cp1)
    # bf16 output is lossless here: it is only ever consumed as bf16 conv2 patches.
    y1_act = _bn_act(y1_raw, s1, b1, til1, jnp.bfloat16)

    # ---- conv2 (tiled matmul + batch stats) ---------------------------------
    y1_nhwc = y1_act[:m, :c_mid].reshape(n, ho, wo, c_mid)
    p2, _, _ = _im2col_3x3(y1_nhwc, 1)
    y2_raw, stats2, til2 = _conv_matmul_stats(p2, w2.reshape(9 * c_mid, c_out), tile_m)
    _, mp2, _, _, cp2 = til2
    s2, b2 = _bn_scale_bias(stats2, m, params["gamma2"], params["beta2"], cp2)

    # ---- BN2 + shortcut + ReLU epilogue -------------------------------------
    if (stride != 1) or (c_in != c_out):
        # 1x1-conv shortcut, matmul fused into the epilogue tile loop.
        cin_p = _round_up(c_in, LANE)
        x_sc = x[:, ::stride, ::stride, :].reshape(m, c_in)
        x_sc = jnp.pad(x_sc, ((0, mp2 - m), (0, cin_p - c_in))).astype(jnp.bfloat16)
        w_sc = jnp.pad(params["wsc"].reshape(c_in, c_out),
                       ((0, cin_p - c_in), (0, cp2 - c_out))).astype(jnp.bfloat16)
        out = _bn_convsc_add_act(y2_raw, x_sc, w_sc, s2, b2, til2)
    else:
        # Identity shortcut (c_in == c_out, stride == 1).
        sc = jnp.pad(x.reshape(m, c_in), ((0, mp2 - m), (0, cp2 - c_out)))
        out = _bn_add_act(y2_raw, sc, s2, b2, til2)

    out = out[:m, :c_out].reshape(n, ho, wo, c_out)
    return jnp.transpose(out, (0, 3, 1, 2))                        # NHWC -> NCHW


# ---------------------------------------------------------------------------
# Deterministic parameter init + pure-JAX f32 reference for verification
# ---------------------------------------------------------------------------
def init_params(key, c_in, c_mid, c_out, stride):
    ks = jax.random.split(key, 7)
    params = {
        "w1": 0.1 * jax.random.normal(ks[0], (3, 3, c_in, c_mid), jnp.float32),
        "w2": 0.1 * jax.random.normal(ks[1], (3, 3, c_mid, c_out), jnp.float32),
        "gamma1": 1.0 + 0.1 * jax.random.normal(ks[2], (c_mid,), jnp.float32),
        "beta1": 0.1 * jax.random.normal(ks[3], (c_mid,), jnp.float32),
        "gamma2": 1.0 + 0.1 * jax.random.normal(ks[4], (c_out,), jnp.float32),
        "beta2": 0.1 * jax.random.normal(ks[5], (c_out,), jnp.float32),
    }
    if stride != 1 or c_in != c_out:
        params["wsc"] = 0.1 * jax.random.normal(ks[6], (1, 1, c_in, c_out), jnp.float32)
    return params


def _ref_conv(x_nchw, w_hwio, stride, pad):
    w_oihw = jnp.transpose(w_hwio, (3, 2, 0, 1))
    return lax.conv_general_dilated(
        x_nchw, w_oihw, window_strides=(stride, stride),
        padding=((pad, pad), (pad, pad)),
        dimension_numbers=("NCHW", "OIHW", "NCHW"),
        precision=lax.Precision.HIGHEST)


def _ref_bn(y_nchw, g, b):
    mean = jnp.mean(y_nchw, axis=(0, 2, 3), keepdims=True)
    var = jnp.mean(jnp.square(y_nchw - mean), axis=(0, 2, 3), keepdims=True)
    return ((y_nchw - mean) * lax.rsqrt(var + EPS)
            * g.reshape(1, -1, 1, 1) + b.reshape(1, -1, 1, 1))


def basicneck_reference(x, params, stride):
    shortcut = x
    if "wsc" in params:
        shortcut = _ref_conv(x, params["wsc"], stride, 0)
    r = _ref_conv(x, params["w1"], stride, 1)
    r = jnp.maximum(_ref_bn(r, params["gamma1"], params["beta1"]), 0.0)
    r = _ref_bn(_ref_conv(r, params["w2"], 1, 1), params["gamma2"], params["beta2"])
    return jnp.maximum(r + shortcut, 0.0)


def _assert_close(out, ref, name):
    # Kernel uses bf16 MXU operands (review request); reference is full f32.
    err = float(jnp.max(jnp.abs(out - ref)))
    rel = float(jnp.linalg.norm(out - ref) / (jnp.linalg.norm(ref) + 1e-12))
    assert err < 0.1 and rel < 0.03, (name, err, rel)


# ---------------------------------------------------------------------------
if __name__ == "__main__":
    key = jax.random.PRNGKey(0)
    kx, kp1, kp2 = jax.random.split(key, 3)

    # Case 1: stride=2, channel change -> fused conv1x1 shortcut path.
    n, c_in, hw = 2, 4, 16
    c_mid, c_out, stride = 8, 8, 2
    x = jax.random.normal(kx, (n, c_in, hw, hw), jnp.float32)
    params = init_params(kp1, c_in, c_mid, c_out, stride)
    out = jax.block_until_ready(basicneck_forward(x, params, stride=stride))
    ref = basicneck_reference(x, params, stride)
    assert out.shape == (n, c_out, hw // 2, hw // 2)
    _assert_close(out, ref, "conv_shortcut")

    # Case 2: stride=1, in_channels == out_channels -> identity shortcut path.
    params2 = init_params(kp2, c_in, c_mid, c_in, 1)
    out2 = jax.block_until_ready(basicneck_forward(x, params2, stride=1))
    ref2 = basicneck_reference(x, params2, 1)
    assert out2.shape == x.shape
    _assert_close(out2, ref2, "identity_shortcut")

    print("KERNEL_OK")
</pallas_src>

<mosaic_0001>
module attributes {stable_mosaic.version = 11 : i64} {
  func.func @_matmul_stats_kernel(%arg0: i32, %arg1: memref<128x128xbf16, #tpu.memory_space<vmem>>, %arg2: memref<128x128xbf16, #tpu.memory_space<vmem>>, %arg3: memref<128x128xf32, #tpu.memory_space<vmem>>, %arg4: memref<1x2x128xf32, #tpu.memory_space<vmem>>) attributes {dimension_semantics = [#tpu.dimension_semantics<parallel>], iteration_bounds = array<i64: 1>, scalar_prefetch = 0 : i64, scratch_operands = 0 : i64, tpu.core_type = #tpu.core_type<tc>, window_params = [{transform_indices = @transform_0, window_bounds = array<i64: 128, 128>}, {pipeline_mode = #tpu.pipeline_mode<synchronous>, transform_indices = @transform_1, window_bounds = array<i64: 128, 128>}, {transform_indices = @transform_2, window_bounds = array<i64: 128, 128>}, {transform_indices = @transform_3, window_bounds = array<i64: 1, 2, 128>}]} {
    %c0 = arith.constant 0 : index
    %c0_0 = arith.constant 0 : index
    %0 = vector.load %arg1[%c0, %c0_0] : memref<128x128xbf16, #tpu.memory_space<vmem>>, vector<128x128xbf16>
    %c0_1 = arith.constant 0 : index
    %c0_2 = arith.constant 0 : index
    %1 = vector.load %arg2[%c0_1, %c0_2] : memref<128x128xbf16, #tpu.memory_space<vmem>>, vector<128x128xbf16>
    %cst = arith.constant dense<0.000000e+00> : vector<128x128xf32>
    %2 = tpu.matmul %0, %1, %cst {dimension_numbers = #tpu.dot_dimension_numbers<[1], [0], [0], [1], [0, 0, 1, 1], [], []>} : vector<128x128xbf16>, vector<128x128xbf16>, vector<128x128xf32> -> vector<128x128xf32>
    %c0_3 = arith.constant 0 : index
    %c0_4 = arith.constant 0 : index
    %3 = vector.load %arg3[%c0_3, %c0_4] : memref<128x128xf32, #tpu.memory_space<vmem>>, vector<128x128xf32>
    tpu.vector_store %arg3[%c0_3, %c0_4], %2 {strides = array<i32>} : memref<128x128xf32, #tpu.memory_space<vmem>>, vector<128x128xf32>,
    %cst_5 = arith.constant dense<0.000000e+00> : vector<128xf32>
    %4 = vector.multi_reduction <add>, %2, %cst_5 [0] : vector<128x128xf32> to vector<128xf32>
    %5 = vector.shape_cast %4 : vector<128xf32> to vector<1x128xf32>
    %c0_6 = arith.constant 0 : index
    %c0_7 = arith.constant 0 : index
    %c0_8 = arith.constant 0 : index
    %6 = vector.load %arg4[%c0_6, %c0_7, %c0_8] : memref<1x2x128xf32, #tpu.memory_space<vmem>>, vector<1x1x128xf32>
    %7 = vector.shape_cast %6 : vector<1x1x128xf32> to vector<1x128xf32>
    %8 = vector.shape_cast %5 : vector<1x128xf32> to vector<1x1x128xf32>
    tpu.vector_store %arg4[%c0_6, %c0_7, %c0_8], %8 {strides = array<i32>} : memref<1x2x128xf32, #tpu.memory_space<vmem>>, vector<1x1x128xf32>,
    %9 = arith.mulf %2, %2 : vector<128x128xf32>
    %cst_9 = arith.constant dense<0.000000e+00> : vector<128xf32>
    %10 = vector.multi_reduction <add>, %9, %cst_9 [0] : vector<128x128xf32> to vector<128xf32>
    %11 = vector.shape_cast %10 : vector<128xf32> to vector<1x128xf32>
    %c0_10 = arith.constant 0 : index
    %c1 = arith.constant 1 : index
    %c0_11 = arith.constant 0 : index
    %12 = vector.load %arg4[%c0_10, %c1, %c0_11] : memref<1x2x128xf32, #tpu.memory_space<vmem>>, vector<1x1x128xf32>
    %13 = vector.shape_cast %12 : vector<1x1x128xf32> to vector<1x128xf32>
    %14 = vector.shape_cast %11 : vector<1x128xf32> to vector<1x1x128xf32>
    tpu.vector_store %arg4[%c0_10, %c1, %c0_11], %14 {strides = array<i32>} : memref<1x2x128xf32, #tpu.memory_space<vmem>>, vector<1x1x128xf32>,
    return
  }
  func.func @transform_0(%arg0: i32) -> (i32, i32) {
    %c0_i32 = arith.constant 0 : i32
    %c0_i32_0 = arith.constant 0 : i32
    return %arg0, %c0_i32 : i32, i32
  }
  func.func @transform_1(%arg0: i32) -> (i32, i32) {
    %c0_i32 = arith.constant 0 : i32
    %c0_i32_0 = arith.constant 0 : i32
    %c0_i32_1 = arith.constant 0 : i32
    return %c0_i32, %c0_i32_0 : i32, i32
  }
  func.func @transform_2(%arg0: i32) -> (i32, i32) {
    %c0_i32 = arith.constant 0 : i32
    %c0_i32_0 = arith.constant 0 : i32
    return %arg0, %c0_i32 : i32, i32
  }
  func.func @transform_3(%arg0: i32) -> (i32, i32, i32) {
    %c0_i32 = arith.constant 0 : i32
    %c0_i32_0 = arith.constant 0 : i32
    %c0_i32_1 = arith.constant 0 : i32
    return %arg0, %c0_i32, %c0_i32_0 : i32, i32, i32
  }
}

module attributes {stable_mosaic.version = 11 : i64} {
  func.func @_bn_act_kernel(%arg0: i32, %arg1: memref<128x128xf32, #tpu.memory_space<vmem>>, %arg2: memref<1x128xf32, #tpu.memory_space<vmem>>, %arg3: memref<1x128xf32, #tpu.memory_space<vmem>>, %arg4: memref<128x128xbf16, #tpu.memory_space<vmem>>) attributes {dimension_semantics = [#tpu.dimension_semantics<parallel>], iteration_bounds = array<i64: 1>, scalar_prefetch = 0 : i64, scratch_operands = 0 : i64, tpu.core_type = #tpu.core_type<tc>, window_params = [{transform_indices = @transform_0, window_bounds = array<i64: 128, 128>}, {pipeline_mode = #tpu.pipeline_mode<synchronous>, transform_indices = @transform_1, window_bounds = array<i64: 1, 128>}, {pipeline_mode = #tpu.pipeline_mode<synchronous>, transform_indices = @transform_2, window_bounds = array<i64: 1, 128>}, {transform_indices = @transform_3, window_bounds = array<i64: 128, 128>}]} {
    %c0 = arith.constant 0 : index
    %c0_0 = arith.constant 0 : index
    %0 = vector.load %arg1[%c0, %c0_0] : memref<128x128xf32, #tpu.memory_space<vmem>>, vector<128x128xf32>
    %c0_1 = arith.constant 0 : index
    %c0_2 = arith.constant 0 : index
    %1 = vector.load %arg2[%c0_1, %c0_2] : memref<1x128xf32, #tpu.memory_space<vmem>>, vector<1x128xf32>
    %2 = vector.broadcast %1 : vector<1x128xf32> to vector<128x128xf32>
    %3 = arith.mulf %0, %2 : vector<128x128xf32>
    %c0_3 = arith.constant 0 : index
    %c0_4 = arith.constant 0 : index
    %4 = vector.load %arg3[%c0_3, %c0_4] : memref<1x128xf32, #tpu.memory_space<vmem>>, vector<1x128xf32>
    %5 = vector.broadcast %4 : vector<1x128xf32> to vector<128x128xf32>
    %6 = arith.addf %3, %5 : vector<128x128xf32>
    %cst = arith.constant 0.000000e+00 : f32
    %7 = vector.broadcast %cst : f32 to vector<128x128xf32>
    %8 = arith.maximumf %6, %7 : vector<128x128xf32>
    %9 = arith.truncf %8 : vector<128x128xf32> to vector<128x128xbf16>
    %c0_5 = arith.constant 0 : index
    %c0_6 = arith.constant 0 : index
    %10 = vector.load %arg4[%c0_5, %c0_6] : memref<128x128xbf16, #tpu.memory_space<vmem>>, vector<128x128xbf16>
    tpu.vector_store %arg4[%c0_5, %c0_6], %9 {strides = array<i32>} : memref<128x128xbf16, #tpu.memory_space<vmem>>, vector<128x128xbf16>,
    return
  }
  func.func @transform_0(%arg0: i32) -> (i32, i32) {
    %c0_i32 = arith.constant 0 : i32
    %c0_i32_0 = arith.constant 0 : i32
    return %arg0, %c0_i32 : i32, i32
  }
  func.func @transform_1(%arg0: i32) -> (i32, i32) {
    %c0_i32 = arith.constant 0 : i32
    %c0_i32_0 = arith.constant 0 : i32
    %c0_i32_1 = arith.constant 0 : i32
    return %c0_i32, %c0_i32_0 : i32, i32
  }
  func.func @transform_2(%arg0: i32) -> (i32, i32) {
    %c0_i32 = arith.constant 0 : i32
    %c0_i32_0 = arith.constant 0 : i32
    %c0_i32_1 = arith.constant 0 : i32
    return %c0_i32, %c0_i32_0 : i32, i32
  }
  func.func @transform_3(%arg0: i32) -> (i32, i32) {
    %c0_i32 = arith.constant 0 : i32
    %c0_i32_0 = arith.constant 0 : i32
    return %arg0, %c0_i32 : i32, i32
  }
}

module attributes {stable_mosaic.version = 11 : i64} {
  func.func @_bn_convsc_add_act_kernel(%arg0: i32, %arg1: memref<128x128xf32, #tpu.memory_space<vmem>>, %arg2: memref<128x128xbf16, #tpu.memory_space<vmem>>, %arg3: memref<128x128xbf16, #tpu.memory_space<vmem>>, %arg4: memref<1x128xf32, #tpu.memory_space<vmem>>, %arg5: memref<1x128xf32, #tpu.memory_space<vmem>>, %arg6: memref<128x128xf32, #tpu.memory_space<vmem>>) attributes {dimension_semantics = [#tpu.dimension_semantics<parallel>], iteration_bounds = array<i64: 1>, scalar_prefetch = 0 : i64, scratch_operands = 0 : i64, tpu.core_type = #tpu.core_type<tc>, window_params = [{transform_indices = @transform_0, window_bounds = array<i64: 128, 128>}, {transform_indices = @transform_1, window_bounds = array<i64: 128, 128>}, {pipeline_mode = #tpu.pipeline_mode<synchronous>, transform_indices = @transform_2, window_bounds = array<i64: 128, 128>}, {pipeline_mode = #tpu.pipeline_mode<synchronous>, transform_indices = @transform_3, window_bounds = array<i64: 1, 128>}, {pipeline_mode = #tpu.pipeline_mode<synchronous>, transform_indices = @transform_4, window_bounds = array<i64: 1, 128>}, {transform_indices = @transform_5, window_bounds = array<i64: 128, 128>}]} {
    %c0 = arith.constant 0 : index
    %c0_0 = arith.constant 0 : index
    %0 = vector.load %arg2[%c0, %c0_0] : memref<128x128xbf16, #tpu.memory_space<vmem>>, vector<128x128xbf16>
    %c0_1 = arith.constant 0 : index
    %c0_2 = arith.constant 0 : index
    %1 = vector.load %arg3[%c0_1, %c0_2] : memref<128x128xbf16, #tpu.memory_space<vmem>>, vector<128x128xbf16>
    %cst = arith.constant dense<0.000000e+00> : vector<128x128xf32>
    %2 = tpu.matmul %0, %1, %cst {dimension_numbers = #tpu.dot_dimension_numbers<[1], [0], [0], [1], [0, 0, 1, 1], [], []>} : vector<128x128xbf16>, vector<128x128xbf16>, vector<128x128xf32> -> vector<128x128xf32>
    %c0_3 = arith.constant 0 : index
    %c0_4 = arith.constant 0 : index
    %3 = vector.load %arg1[%c0_3, %c0_4] : memref<128x128xf32, #tpu.memory_space<vmem>>, vector<128x128xf32>
    %c0_5 = arith.constant 0 : index
    %c0_6 = arith.constant 0 : index
    %4 = vector.load %arg4[%c0_5, %c0_6] : memref<1x128xf32, #tpu.memory_space<vmem>>, vector<1x128xf32>
    %5 = vector.broadcast %4 : vector<1x128xf32> to vector<128x128xf32>
    %6 = arith.mulf %3, %5 : vector<128x128xf32>
    %c0_7 = arith.constant 0 : index
    %c0_8 = arith.constant 0 : index
    %7 = vector.load %arg5[%c0_7, %c0_8] : memref<1x128xf32, #tpu.memory_space<vmem>>, vector<1x128xf32>
    %8 = vector.broadcast %7 : vector<1x128xf32> to vector<128x128xf32>
    %9 = arith.addf %6, %8 : vector<128x128xf32>
    %10 = arith.addf %9, %2 : vector<128x128xf32>
    %cst_9 = arith.constant 0.000000e+00 : f32
    %11 = vector.broadcast %cst_9 : f32 to vector<128x128xf32>
    %12 = arith.maximumf %10, %11 : vector<128x128xf32>
    %c0_10 = arith.constant 0 : index
    %c0_11 = arith.constant 0 : index
    %13 = vector.load %arg6[%c0_10, %c0_11] : memref<128x128xf32, #tpu.memory_space<vmem>>, vector<128x128xf32>
    tpu.vector_store %arg6[%c0_10, %c0_11], %12 {strides = array<i32>} : memref<128x128xf32, #tpu.memory_space<vmem>>, vector<128x128xf32>,
    return
  }
  func.func @transform_0(%arg0: i32) -> (i32, i32) {
    %c0_i32 = arith.constant 0 : i32
    %c0_i32_0 = arith.constant 0 : i32
    return %arg0, %c0_i32 : i32, i32
  }
  func.func @transform_1(%arg0: i32) -> (i32, i32) {
    %c0_i32 = arith.constant 0 : i32
    %c0_i32_0 = arith.constant 0 : i32
    return %arg0, %c0_i32 : i32, i32
  }
  func.func @transform_2(%arg0: i32) -> (i32, i32) {
    %c0_i32 = arith.constant 0 : i32
    %c0_i32_0 = arith.constant 0 : i32
    %c0_i32_1 = arith.constant 0 : i32
    return %c0_i32, %c0_i32_0 : i32, i32
  }
  func.func @transform_3(%arg0: i32) -> (i32, i32) {
    %c0_i32 = arith.constant 0 : i32
    %c0_i32_0 = arith.constant 0 : i32
    %c0_i32_1 = arith.constant 0 : i32
    return %c0_i32, %c0_i32_0 : i32, i32
  }
  func.func @transform_4(%arg0: i32) -> (i32, i32) {
    %c0_i32 = arith.constant 0 : i32
    %c0_i32_0 = arith.constant 0 : i32
    %c0_i32_1 = arith.constant 0 : i32
    return %c0_i32, %c0_i32_0 : i32, i32
  }
  func.func @transform_5(%arg0: i32) -> (i32, i32) {
    %c0_i32 = arith.constant 0 : i32
    %c0_i32_0 = arith.constant 0 : i32
    return %arg0, %c0_i32 : i32, i32
  }
}

</mosaic_0001>

<llo_original>
// kernel: basicneck_forward.5
$region0: #{basicneck_forward.5}
  #allocation0 [shape = 'u32[]', space=smem, size = 0x4, offset = 0x4, fixed_abs, tag = 'smem constant byte address 0x4 - core index']
  #allocation1 [shape = 'u32[144,128]{1,0:T(1,128)}', space=vmem, size = 0x12000, scoped, tag = 'internal scratch']
  %s0 = inlined_call_operand.vmem [shape: f32[128,128], index: 0, kind: input, shape index: {}]
  %s1 = inlined_call_operand.vmem [shape: f32[1,128], index: 1, kind: input, shape index: {}]
  %s2 = inlined_call_operand.vmem [shape: f32[1,128], index: 2, kind: input, shape index: {}]
  %s3 = inlined_call_operand.vmem [shape: bf16[128,128], index: 3, kind: output, shape index: {}]
  %s4 = sld [smem:[#allocation0]]
  $region22: #{basicneck_forward.5} parent=0
    _
  %s6 = ssub.s32 1, %s4
  %s7 = scalar_select 0, %s6, %s4
  // Predicated region
  $region2: #{basicneck_forward.5} parent=0 // pred_check
    _
  $region3: #{basicneck_forward.5} parent=0 // pred_check_branch
    %9 = sbr.rel (0) target = $region5
  $region4: #{basicneck_forward.5} parent=0 // pred_region
    _
  $region5: #{basicneck_forward.5} parent=0 // pred_fallthru
    _
  // Predicated region
  $region6: #{basicneck_forward.5} parent=0 // pred_check
    _
  $region7: #{basicneck_forward.5} parent=0 // pred_check_branch
    %11 = sbr.rel (0) target = $region9
  $region8: #{basicneck_forward.5} parent=0 // pred_region
    _
  $region9: #{basicneck_forward.5} parent=0 // pred_fallthru
    _
  // Predicated region
  $region10: #{basicneck_forward.5} parent=0 // pred_check
    _
  $region11: #{basicneck_forward.5} parent=0 // pred_check_branch
    %13 = sbr.rel (0) target = $region13
  $region12: #{basicneck_forward.5} parent=0 // pred_region
    _
  $region13: #{basicneck_forward.5} parent=0 // pred_fallthru
    _
  %v14 = vld [vmem:[%s0] sm:$0xff]
  %v15 = vld [vmem:[%s0 + $0x8] sm:$0xff]
  %v16 = vld [vmem:[%s0 + $0x10] sm:$0xff]
  %v17 = vld [vmem:[%s0 + $0x18] sm:$0xff]
  %v18 = vld [vmem:[%s0 + $0x20] sm:$0xff]
  %v19 = vld [vmem:[%s0 + $0x28] sm:$0xff]
  %v20 = vld [vmem:[%s0 + $0x30] sm:$0xff]
  %v21 = vld [vmem:[%s0 + $0x38] sm:$0xff]
  %v22 = vld [vmem:[%s0 + $0x40] sm:$0xff]
  %v23 = vld [vmem:[%s0 + $0x48] sm:$0xff]
  %v24 = vld [vmem:[%s0 + $0x50] sm:$0xff]
  %v25 = vld [vmem:[%s0 + $0x58] sm:$0xff]
  %v26 = vld [vmem:[%s0 + $0x60] sm:$0xff]
  %v27 = vld [vmem:[%s0 + $0x68] sm:$0xff]
  %v28 = vld [vmem:[%s0 + $0x70] sm:$0xff]
  %v29 = vld [vmem:[%s0 + $0x78] sm:$0xff]
  %v30 = vld [vmem:[%s1] sm:$0x1]
  %v32 = vlaneseq
  %v33 = vshrl.u32 %v32, 7
  %v34 = vsub.s32 0, %v33
  %v35 = vrot.slane %v30, %v34
  %v37 = vmul.f32 %v14, %v35
  %v38 = vmul.f32 %v15, %v35
  %v39 = vmul.f32 %v16, %v35
  %v40 = vmul.f32 %v17, %v35
  %v41 = vmul.f32 %v18, %v35
  %v42 = vmul.f32 %v19, %v35
  %v43 = vmul.f32 %v20, %v35
  %v44 = vmul.f32 %v21, %v35
  %v45 = vmul.f32 %v22, %v35
  %v46 = vmul.f32 %v23, %v35
  %v47 = vmul.f32 %v24, %v35
  %v48 = vmul.f32 %v25, %v35
  %v49 = vmul.f32 %v26, %v35
  %v50 = vmul.f32 %v27, %v35
  %v51 = vmul.f32 %v28, %v35
  %v52 = vmul.f32 %v29, %v35
  %v53 = vld [vmem:[%s2] sm:$0x1]
  %v55 = vlaneseq
  %v56 = vshrl.u32 %v55, 7
  %v57 = vsub.s32 0, %v56
  %v58 = vrot.slane %v53, %v57
  %v60 = vadd.f32 %v37, %v58
  %v61 = vadd.f32 %v38, %v58
  %v62 = vadd.f32 %v39, %v58
  %v63 = vadd.f32 %v40, %v58
  %v64 = vadd.f32 %v41, %v58
  %v65 = vadd.f32 %v42, %v58
  %v66 = vadd.f32 %v43, %v58
  %v67 = vadd.f32 %v44, %v58
  %v68 = vadd.f32 %v45, %v58
  %v69 = vadd.f32 %v46, %v58
  %v70 = vadd.f32 %v47, %v58
  %v71 = vadd.f32 %v48, %v58
  %v72 = vadd.f32 %v49, %v58
  %v73 = vadd.f32 %v50, %v58
  %v74 = vadd.f32 %v51, %v58
  %v75 = vadd.f32 %v52, %v58
  %v76 = vmax.f32 %v60, 0.0
  %v77 = vmax.f32 %v61, 0.0
  %v78 = vmax.f32 %v62, 0.0
  %v79 = vmax.f32 %v63, 0.0
  %v80 = vmax.f32 %v64, 0.0
  %v81 = vmax.f32 %v65, 0.0
  %v82 = vmax.f32 %v66, 0.0
  %v83 = vmax.f32 %v67, 0.0
  %v84 = vmax.f32 %v68, 0.0
  %v85 = vmax.f32 %v69, 0.0
  %v86 = vmax.f32 %v70, 0.0
  %v87 = vmax.f32 %v71, 0.0
  %v88 = vmax.f32 %v72, 0.0
  %v89 = vmax.f32 %v73, 0.0
  %v90 = vmax.f32 %v74, 0.0
  %v91 = vmax.f32 %v75, 0.0
  %v92 = vpack.c.bf16 %v77, %v76
  %v93 = vpack.c.bf16 %v79, %v78
  %v94 = vpack.c.bf16 %v81, %v80
  %v95 = vpack.c.bf16 %v83, %v82
  %v96 = vpack.c.bf16 %v85, %v84
  %v97 = vpack.c.bf16 %v87, %v86
  %v98 = vpack.c.bf16 %v89, %v88
  %v99 = vpack.c.bf16 %v91, %v90
  %v108 = vunpack.c.l.b16 %v92
  %v109 = vunpack.c.h.b16 %v92
  %v110 = vunpack.c.l.b16 %v93
  %v111 = vunpack.c.h.b16 %v93
  %v112 = vunpack.c.l.b16 %v94
  %v113 = vunpack.c.h.b16 %v94
  %v114 = vunpack.c.l.b16 %v95
  %v115 = vunpack.c.h.b16 %v95
  %v116 = vunpack.c.l.b16 %v96
  %v117 = vunpack.c.h.b16 %v96
  %v118 = vunpack.c.l.b16 %v97
  %v119 = vunpack.c.h.b16 %v97
  %v120 = vunpack.c.l.b16 %v98
  %v121 = vunpack.c.h.b16 %v98
  %v122 = vunpack.c.l.b16 %v99
  %v123 = vunpack.c.h.b16 %v99
  %v124 = vpack.c.b16 %v108, %v108
  %v125 = vpack.c.b16 %v109, %v109
  %v126 = vpack.c.b16 %v110, %v110
  %v127 = vpack.c.b16 %v111, %v111
  %v128 = vpack.c.b16 %v112, %v112
  %v129 = vpack.c.b16 %v113, %v113
  %v130 = vpack.c.b16 %v114, %v114
  %v131 = vpack.c.b16 %v115, %v115
  %v132 = vpack.c.b16 %v116, %v116
  %v133 = vpack.c.b16 %v117, %v117
  %v134 = vpack.c.b16 %v118, %v118
  %v135 = vpack.c.b16 %v119, %v119
  %v136 = vpack.c.b16 %v120, %v120
  %v137 = vpack.c.b16 %v121, %v121
  %v138 = vpack.c.b16 %v122, %v122
  %v139 = vpack.c.b16 %v123, %v123
  %156 = vst [vmem:[%s3] sm:$0xf] %v124
  %157 = vst [vmem:[%s3 + $0x4] sm:$0xf] %v125
  %158 = vst [vmem:[%s3 + $0x8] sm:$0xf] %v126
  %159 = vst [vmem:[%s3 + $0xc] sm:$0xf] %v127
  %160 = vst [vmem:[%s3 + $0x10] sm:$0xf] %v128
  %161 = vst [vmem:[%s3 + $0x14] sm:$0xf] %v129
  %162 = vst [vmem:[%s3 + $0x18] sm:$0xf] %v130
  %163 = vst [vmem:[%s3 + $0x1c] sm:$0xf] %v131
  %164 = vst [vmem:[%s3 + $0x20] sm:$0xf] %v132
  %165 = vst [vmem:[%s3 + $0x24] sm:$0xf] %v133
  %166 = vst [vmem:[%s3 + $0x28] sm:$0xf] %v134
  %167 = vst [vmem:[%s3 + $0x2c] sm:$0xf] %v135
  %168 = vst [vmem:[%s3 + $0x30] sm:$0xf] %v136
  %169 = vst [vmem:[%s3 + $0x34] sm:$0xf] %v137
  %170 = vst [vmem:[%s3 + $0x38] sm:$0xf] %v138
  %171 = vst [vmem:[%s3 + $0x3c] sm:$0xf] %v139
  // Predicated region
  $region14: #{basicneck_forward.5} parent=0 // pred_check
    _
  $region15: #{basicneck_forward.5} parent=0 // pred_check_branch
    %173 = sbr.rel (0) target = $region17
  $region16: #{basicneck_forward.5} parent=0 // pred_region
    _
  $region17: #{basicneck_forward.5} parent=0 // pred_fallthru
    _
  // Predicated region
  $region18: #{basicneck_forward.5} parent=0 // pred_check
    _
  $region19: #{basicneck_forward.5} parent=0 // pred_check_branch
    %175 = sbr.rel (0) target = $region21
  $region20: #{basicneck_forward.5} parent=0 // pred_region
    _
  $region21: #{basicneck_forward.5} parent=0 // pred_fallthru
    _

// kernel: basicneck_forward.4
$region0: #{basicneck_forward.4}
  #allocation0 [shape = 'u32[]', space=smem, size = 0x4, offset = 0x4, fixed_abs, tag = 'smem constant byte address 0x4 - core index']
  #allocation1 [shape = 'u32[144,128]{1,0:T(1,128)}', space=vmem, size = 0x12000, scoped, tag = 'internal scratch']
  %s0 = inlined_call_operand.vmem [shape: bf16[128,128], index: 0, kind: input, shape index: {}]
  %s1 = inlined_call_operand.vmem [shape: bf16[128,128], index: 1, kind: input, shape index: {}]
  %s2 = inlined_call_operand.vmem [shape: f32[128,128], index: 2, kind: output, shape index: {0}]
  %s3 = inlined_call_operand.vmem [shape: f32[1,2,128], index: 3, kind: output, shape index: {1}]
  %4 = xla_tuple %s2, %s3
  %s5 = sld [smem:[#allocation0]]
  $region26: #{basicneck_forward.4} parent=0
    _
  %s7 = ssub.s32 1, %s5
  %s8 = scalar_select 0, %s7, %s5
  // Predicated region
  $region2: #{basicneck_forward.4} parent=0 // pred_check
    _
  $region3: #{basicneck_forward.4} parent=0 // pred_check_branch
    %10 = sbr.rel (0) target = $region5
  $region4: #{basicneck_forward.4} parent=0 // pred_region
    _
  $region5: #{basicneck_forward.4} parent=0 // pred_fallthru
    _
  // Predicated region
  $region6: #{basicneck_forward.4} parent=0 // pred_check
    _
  $region7: #{basicneck_forward.4} parent=0 // pred_check_branch
    %12 = sbr.rel (0) target = $region9
  $region8: #{basicneck_forward.4} parent=0 // pred_region
    _
  $region9: #{basicneck_forward.4} parent=0 // pred_fallthru
    _
  %v14 = vld [vmem:[%s0] sm:$0xf]
  %v15 = vld [vmem:[%s0 + $0x4] sm:$0xf]
  %v16 = vld [vmem:[%s0 + $0x8] sm:$0xf]
  %v17 = vld [vmem:[%s0 + $0xc] sm:$0xf]
  %v18 = vld [vmem:[%s0 + $0x10] sm:$0xf]
  %v19 = vld [vmem:[%s0 + $0x14] sm:$0xf]
  %v20 = vld [vmem:[%s0 + $0x18] sm:$0xf]
  %v21 = vld [vmem:[%s0 + $0x1c] sm:$0xf]
  %v22 = vld [vmem:[%s0 + $0x20] sm:$0xf]
  %v23 = vld [vmem:[%s0 + $0x24] sm:$0xf]
  %v24 = vld [vmem:[%s0 + $0x28] sm:$0xf]
  %v25 = vld [vmem:[%s0 + $0x2c] sm:$0xf]
  %v26 = vld [vmem:[%s0 + $0x30] sm:$0xf]
  %v27 = vld [vmem:[%s0 + $0x34] sm:$0xf]
  %v28 = vld [vmem:[%s0 + $0x38] sm:$0xf]
  %v29 = vld [vmem:[%s0 + $0x3c] sm:$0xf]
  %v30 = vld [vmem:[%s1] sm:$0xf]
  %v31 = vld [vmem:[%s1 + $0x4] sm:$0xf]
  %v32 = vld [vmem:[%s1 + $0x8] sm:$0xf]
  %v33 = vld [vmem:[%s1 + $0xc] sm:$0xf]
  %v34 = vld [vmem:[%s1 + $0x10] sm:$0xf]
  %v35 = vld [vmem:[%s1 + $0x14] sm:$0xf]
  %v36 = vld [vmem:[%s1 + $0x18] sm:$0xf]
  %v37 = vld [vmem:[%s1 + $0x1c] sm:$0xf]
  %v38 = vld [vmem:[%s1 + $0x20] sm:$0xf]
  %v39 = vld [vmem:[%s1 + $0x24] sm:$0xf]
  %v40 = vld [vmem:[%s1 + $0x28] sm:$0xf]
  %v41 = vld [vmem:[%s1 + $0x2c] sm:$0xf]
  %v42 = vld [vmem:[%s1 + $0x30] sm:$0xf]
  %v43 = vld [vmem:[%s1 + $0x34] sm:$0xf]
  %v44 = vld [vmem:[%s1 + $0x38] sm:$0xf]
  %v45 = vld [vmem:[%s1 + $0x3c] sm:$0xf]
  %v62 = vunpack.c.l.b16 %v14
  %v63 = vunpack.c.l.b16 %v15
  %v64 = vunpack.c.l.b16 %v16
  %v65 = vunpack.c.l.b16 %v17
  %v66 = vunpack.c.l.b16 %v18
  %v67 = vunpack.c.l.b16 %v19
  %v68 = vunpack.c.l.b16 %v20
  %v69 = vunpack.c.l.b16 %v21
  %v70 = vunpack.c.l.b16 %v22
  %v71 = vunpack.c.l.b16 %v23
  %v72 = vunpack.c.l.b16 %v24
  %v73 = vunpack.c.l.b16 %v25
  %v74 = vunpack.c.l.b16 %v26
  %v75 = vunpack.c.l.b16 %v27
  %v76 = vunpack.c.l.b16 %v28
  %v77 = vunpack.c.l.b16 %v29
  %v78 = vpack.c.b16 %v63, %v62
  %v79 = vpack.c.b16 %v65, %v64
  %v80 = vpack.c.b16 %v67, %v66
  %v81 = vpack.c.b16 %v69, %v68
  %v82 = vpack.c.b16 %v71, %v70
  %v83 = vpack.c.b16 %v73, %v72
  %v84 = vpack.c.b16 %v75, %v74
  %v85 = vpack.c.b16 %v77, %v76
  %v110 = vunpack.c.l.b16 %v30
  %v111 = vunpack.c.l.b16 %v31
  %v112 = vunpack.c.l.b16 %v32
  %v113 = vunpack.c.l.b16 %v33
  %v114 = vunpack.c.l.b16 %v34
  %v115 = vunpack.c.l.b16 %v35
  %v116 = vunpack.c.l.b16 %v36
  %v117 = vunpack.c.l.b16 %v37
  %v118 = vunpack.c.l.b16 %v38
  %v119 = vunpack.c.l.b16 %v39
  %v120 = vunpack.c.l.b16 %v40
  %v121 = vunpack.c.l.b16 %v41
  %v122 = vunpack.c.l.b16 %v42
  %v123 = vunpack.c.l.b16 %v43
  %v124 = vunpack.c.l.b16 %v44
  %v125 = vunpack.c.l.b16 %v45
  %v126 = vpack.c.b16 %v111, %v110
  %v127 = vpack.c.b16 %v113, %v112
  %v128 = vpack.c.b16 %v115, %v114
  %v129 = vpack.c.b16 %v117, %v116
  %v130 = vpack.c.b16 %v119, %v118
  %v131 = vpack.c.b16 %v121, %v120
  %v132 = vpack.c.b16 %v123, %v122
  %v133 = vpack.c.b16 %v125, %v124
  %142 = vmatprep.subr.bf16.mxu0 0
  %143 = vmatpush1.bf16.msra.mxu0 %v133
  %144 = vmatprep.subr.bf16.mxu0 0
  %145 = vmatpush1.bf16.msra.mxu0 %v132
  %146 = vmatprep.subr.bf16.mxu0 0
  %147 = vmatpush1.bf16.msra.mxu0 %v131
  %148 = vmatprep.subr.bf16.mxu0 0
  %149 = vmatpush1.bf16.msra.mxu0 %v130
  %150 = vmatprep.subr.bf16.mxu0 0
  %151 = vmatpush1.bf16.msra.mxu0 %v129
  %152 = vmatprep.subr.bf16.mxu0 0
  %153 = vmatpush1.bf16.msra.mxu0 %v128
  %154 = vmatprep.subr.bf16.mxu0 0
  %155 = vmatpush1.bf16.msra.mxu0 %v127
  %156 = vmatprep.subr.bf16.mxu0 0
  %157 = vmatpush1.bf16.msra.mxu0 %v126
  %158 = vmatprep.subr.bf16.mxu0 0
  %159 = vmatpush2.bf16.msra.mxu0 0
  %160 = vmatprep.subr.bf16.mxu0 0
  %161 = vmatpush2.bf16.msra.mxu0 0
  %162 = vmatprep.subr.bf16.mxu0 0
  %163 = vmatpush2.bf16.msra.mxu0 0
  %164 = vmatprep.subr.bf16.mxu0 0
  %165 = vmatpush2.bf16.msra.mxu0 0
  %166 = vmatprep.subr.bf16.mxu0 0
  %167 = vmatpush2.bf16.msra.mxu0 0
  %168 = vmatprep.subr.bf16.mxu0 0
  %169 = vmatpush2.bf16.msra.mxu0 0
  %170 = vmatprep.subr.bf16.mxu0 0
  %171 = vmatpush2.bf16.msra.mxu0 0
  %172 = vmatprep.subr.bf16.mxu0 0
  %173 = vmatpush2.bf16.msra.mxu0 0
  %174 = vmatprep.mubr.bf16.mxu0 0
  %175 = vmatmul.mubr.bf16.gmra.mxu0 %v78
  %v176 = vpop.f32.mrf.mxu0
  %v177 = vadd.f32 0.0, %v176
  %v178 = vpop.f32.mrf.mxu0
  %v179 = vpop.f32.mrf.mxu0
  %v180 = vadd.f32 0.0, %v179
  %v181 = vpop.f32.mrf.mxu0
  %182 = vmatprep.mubr.bf16.mxu0 0
  %183 = vmatmul.mubr.bf16.gmra.mxu0 %v79
  %v184 = vpop.f32.mrf.mxu0
  %v185 = vadd.f32 0.0, %v184
  %v186 = vpop.f32.mrf.mxu0
  %v187 = vpop.f32.mrf.mxu0
  %v188 = vadd.f32 0.0, %v187
  %v189 = vpop.f32.mrf.mxu0
  %190 = vmatprep.mubr.bf16.mxu0 0
  %191 = vmatmul.mubr.bf16.gmra.mxu0 %v80
  %v192 = vpop.f32.mrf.mxu0
  %v193 = vadd.f32 0.0, %v192
  %v194 = vpop.f32.mrf.mxu0
  %v195 = vpop.f32.mrf.mxu0
  %v196 = vadd.f32 0.0, %v195
  %v197 = vpop.f32.mrf.mxu0
  %198 = vmatprep.mubr.bf16.mxu0 0
  %199 = vmatmul.mubr.bf16.gmra.mxu0 %v81
  %v200 = vpop.f32.mrf.mxu0
  %v201 = vadd.f32 0.0, %v200
  %v202 = vpop.f32.mrf.mxu0
  %v203 = vpop.f32.mrf.mxu0
  %v204 = vadd.f32 0.0, %v203
  %v205 = vpop.f32.mrf.mxu0
  %206 = vmatprep.mubr.bf16.mxu0 0
  %207 = vmatmul.mubr.bf16.gmra.mxu0 %v82
  %v208 = vpop.f32.mrf.mxu0
  %v209 = vadd.f32 0.0, %v208
  %v210 = vpop.f32.mrf.mxu0
  %v211 = vpop.f32.mrf.mxu0
  %v212 = vadd.f32 0.0, %v211
  %v213 = vpop.f32.mrf.mxu0
  %214 = vmatprep.mubr.bf16.mxu0 0
  %215 = vmatmul.mubr.bf16.gmra.mxu0 %v83
  %v216 = vpop.f32.mrf.mxu0
  %v217 = vadd.f32 0.0, %v216
  %v218 = vpop.f32.mrf.mxu0
  %v219 = vpop.f32.mrf.mxu0
  %v220 = vadd.f32 0.0, %v219
  %v221 = vpop.f32.mrf.mxu0
  %222 = vmatprep.mubr.bf16.mxu0 0
  %223 = vmatmul.mubr.bf16.gmra.mxu0 %v84
  %v224 = vpop.f32.mrf.mxu0
  %v225 = vadd.f32 0.0, %v224
  %v226 = vpop.f32.mrf.mxu0
  %v227 = vpop.f32.mrf.mxu0
  %v228 = vadd.f32 0.0, %v227
  %v229 = vpop.f32.mrf.mxu0
  %230 = vmatprep.mubr.bf16.mxu0 0
  %231 = vmatmul.mubr.bf16.gmra.mxu0 %v85
  %v232 = vpop.f32.mrf.mxu0
  %v233 = vadd.f32 0.0, %v232
  %v234 = vpop.f32.mrf.mxu0
  %v235 = vpop.f32.mrf.mxu0
  %v236 = vadd.f32 0.0, %v235
  %v237 = vpop.f32.mrf.mxu0
  %238 = vdwg.mxu0
  %239 = vst [vmem:[%s2] sm:$0xff] %v177
  %240 = vst [vmem:[%s2 + $0x8] sm:$0xff] %v180
  %241 = vst [vmem:[%s2 + $0x10] sm:$0xff] %v185
  %242 = vst [vmem:[%s2 + $0x18] sm:$0xff] %v188
  %243 = vst [vmem:[%s2 + $0x20] sm:$0xff] %v193
  %244 = vst [vmem:[%s2 + $0x28] sm:$0xff] %v196
  %245 = vst [vmem:[%s2 + $0x30] sm:$0xff] %v201
  %246 = vst [vmem:[%s2 + $0x38] sm:$0xff] %v204
  %247 = vst [vmem:[%s2 + $0x40] sm:$0xff] %v209
  %248 = vst [vmem:[%s2 + $0x48] sm:$0xff] %v212
  %249 = vst [vmem:[%s2 + $0x50] sm:$0xff] %v217
  %250 = vst [vmem:[%s2 + $0x58] sm:$0xff] %v220
  %251 = vst [vmem:[%s2 + $0x60] sm:$0xff] %v225
  %252 = vst [vmem:[%s2 + $0x68] sm:$0xff] %v228
  %253 = vst [vmem:[%s2 + $0x70] sm:$0xff] %v233
  %254 = vst [vmem:[%s2 + $0x78] sm:$0xff] %v236
  %v255 = vadd.f32 %v177, %v180
  %v256 = vadd.f32 %v255, %v185
  %v257 = vadd.f32 %v256, %v188
  %v258 = vadd.f32 %v257, %v193
  %v259 = vadd.f32 %v258, %v196
  %v260 = vadd.f32 %v259, %v201
  %v261 = vadd.f32 %v260, %v204
  %v262 = vadd.f32 %v261, %v209
  %v263 = vadd.f32 %v262, %v212
  %v264 = vadd.f32 %v263, %v217
  %v265 = vadd.f32 %v264, %v220
  %v266 = vadd.f32 %v265, %v225
  %v267 = vadd.f32 %v266, %v228
  %v268 = vadd.f32 %v267, %v233
  %v269 = vadd.f32 %v268, %v236
  %v270 = vrot.slane %v269, 4
  %v271 = vadd.f32 %v269, %v270
  %v272 = vrot.slane %v271, 2
  %v273 = vadd.f32 %v271, %v272
  %v274 = vrot.slane %v273, 1
  %v275 = vadd.f32 %v273, %v274
  %276 = vst [vmem:[%s3] sm:$0x1] %v275
  %v277 = vmul.f32 %v177, %v177
  %v278 = vmul.f32 %v180, %v180
  %v279 = vmul.f32 %v185, %v185
  %v280 = vmul.f32 %v188, %v188
  %v281 = vmul.f32 %v193, %v193
  %v282 = vmul.f32 %v196, %v196
  %v283 = vmul.f32 %v201, %v201
  %v284 = vmul.f32 %v204, %v204
  %v285 = vmul.f32 %v209, %v209
  %v286 = vmul.f32 %v212, %v212
  %v287 = vmul.f32 %v217, %v217
  %v288 = vmul.f32 %v220, %v220
  %v289 = vmul.f32 %v225, %v225
  %v290 = vmul.f32 %v228, %v228
  %v291 = vmul.f32 %v233, %v233
  %v292 = vmul.f32 %v236, %v236
  %v293 = vadd.f32 %v277, %v278
  %v294 = vadd.f32 %v293, %v279
  %v295 = vadd.f32 %v294, %v280
  %v296 = vadd.f32 %v295, %v281
  %v297 = vadd.f32 %v296, %v282
  %v298 = vadd.f32 %v297, %v283
  %v299 = vadd.f32 %v298, %v284
  %v300 = vadd.f32 %v299, %v285
  %v301 = vadd.f32 %v300, %v286
  %v302 = vadd.f32 %v301, %v287
  %v303 = vadd.f32 %v302, %v288
  %v304 = vadd.f32 %v303, %v289
  %v305 = vadd.f32 %v304, %v290
  %v306 = vadd.f32 %v305, %v291
  %v307 = vadd.f32 %v306, %v292
  %v308 = vrot.slane %v307, 4
  %v309 = vadd.f32 %v307, %v308
  %v310 = vrot.slane %v309, 2
  %v311 = vadd.f32 %v309, %v310
  %v312 = vrot.slane %v311, 1
  %v313 = vadd.f32 %v311, %v312
  %314 = vst [vmem:[%s3 + $0x1] sm:$0x1] %v313
  // Predicated region
  $region10: #{basicneck_forward.4} parent=0 // pred_check
    _
  $region11: #{basicneck_forward.4} parent=0 // pred_check_branch
    %316 = sbr.rel (0) target = $region13
  $region12: #{basicneck_forward.4} parent=0 // pred_region
    _
  $region13: #{basicneck_forward.4} parent=0 // pred_fallthru
    _
  // Predicated region
  $region14: #{basicneck_forward.4} parent=0 // pred_check
    _
  $region15: #{basicneck_forward.4} parent=0 // pred_check_branch
    %318 = sbr.rel (0) target = $region17
  $region16: #{basicneck_forward.4} parent=0 // pred_region
    _
  $region17: #{basicneck_forward.4} parent=0 // pred_fallthru
    _
  // Predicated region
  $region18: #{basicneck_forward.4} parent=0 // pred_check
    _
  $region19: #{basicneck_forward.4} parent=0 // pred_check_branch
    %320 = sbr.rel (0) target = $region21
  $region20: #{basicneck_forward.4} parent=0 // pred_region
    _
  $region21: #{basicneck_forward.4} parent=0 // pred_fallthru
    _
  // Predicated region
  $region22: #{basicneck_forward.4} parent=0 // pred_check
    _
  $region23: #{basicneck_forward.4} parent=0 // pred_check_branch
    %322 = sbr.rel (0) target = $region25
  $region24: #{basicneck_forward.4} parent=0 // pred_region
    _
  $region25: #{basicneck_forward.4} parent=0 // pred_fallthru
    _

// kernel: basicneck_forward.7
$region0: #{basicneck_forward.7}
  #allocation0 [shape = 'u32[]', space=smem, size = 0x4, offset = 0x4, fixed_abs, tag = 'smem constant byte address 0x4 - core index']
  #allocation1 [shape = 'u32[144,128]{1,0:T(1,128)}', space=vmem, size = 0x12000, scoped, tag = 'internal scratch']
  %s0 = inlined_call_operand.vmem [shape: f32[128,128], index: 0, kind: input, shape index: {}]
  %s1 = inlined_call_operand.vmem [shape: bf16[128,128], index: 1, kind: input, shape index: {}]
  %s2 = inlined_call_operand.vmem [shape: bf16[128,128], index: 2, kind: input, shape index: {}]
  %s3 = inlined_call_operand.vmem [shape: f32[1,128], index: 3, kind: input, shape index: {}]
  %s4 = inlined_call_operand.vmem [shape: f32[1,128], index: 4, kind: input, shape index: {}]
  %s5 = inlined_call_operand.vmem [shape: f32[128,128], index: 5, kind: output, shape index: {}]
  %s6 = sld [smem:[#allocation0]]
  $region30: #{basicneck_forward.7} parent=0
    _
  %s8 = ssub.s32 1, %s6
  %s9 = scalar_select 0, %s8, %s6
  // Predicated region
  $region2: #{basicneck_forward.7} parent=0 // pred_check
    _
  $region3: #{basicneck_forward.7} parent=0 // pred_check_branch
    %11 = sbr.rel (0) target = $region5
  $region4: #{basicneck_forward.7} parent=0 // pred_region
    _
  $region5: #{basicneck_forward.7} parent=0 // pred_fallthru
    _
  // Predicated region
  $region6: #{basicneck_forward.7} parent=0 // pred_check
    _
  $region7: #{basicneck_forward.7} parent=0 // pred_check_branch
    %13 = sbr.rel (0) target = $region9
  $region8: #{basicneck_forward.7} parent=0 // pred_region
    _
  $region9: #{basicneck_forward.7} parent=0 // pred_fallthru
    _
  // Predicated region
  $region10: #{basicneck_forward.7} parent=0 // pred_check
    _
  $region11: #{basicneck_forward.7} parent=0 // pred_check_branch
    %15 = sbr.rel (0) target = $region13
  $region12: #{basicneck_forward.7} parent=0 // pred_region
    _
  $region13: #{basicneck_forward.7} parent=0 // pred_fallthru
    _
  // Predicated region
  $region14: #{basicneck_forward.7} parent=0 // pred_check
    _
  $region15: #{basicneck_forward.7} parent=0 // pred_check_branch
    %17 = sbr.rel (0) target = $region17
  $region16: #{basicneck_forward.7} parent=0 // pred_region
    _
  $region17: #{basicneck_forward.7} parent=0 // pred_fallthru
    _
  // Predicated region
  $region18: #{basicneck_forward.7} parent=0 // pred_check
    _
  $region19: #{basicneck_forward.7} parent=0 // pred_check_branch
    %19 = sbr.rel (0) target = $region21
  $region20: #{basicneck_forward.7} parent=0 // pred_region
    _
  $region21: #{basicneck_forward.7} parent=0 // pred_fallthru
    _
  %v21 = vld [vmem:[%s1] sm:$0xf]
  %v22 = vld [vmem:[%s1 + $0x4] sm:$0xf]
  %v23 = vld [vmem:[%s1 + $0x8] sm:$0xf]
  %v24 = vld [vmem:[%s1 + $0xc] sm:$0xf]
  %v25 = vld [vmem:[%s1 + $0x10] sm:$0xf]
  %v26 = vld [vmem:[%s1 + $0x14] sm:$0xf]
  %v27 = vld [vmem:[%s1 + $0x18] sm:$0xf]
  %v28 = vld [vmem:[%s1 + $0x1c] sm:$0xf]
  %v29 = vld [vmem:[%s1 + $0x20] sm:$0xf]
  %v30 = vld [vmem:[%s1 + $0x24] sm:$0xf]
  %v31 = vld [vmem:[%s1 + $0x28] sm:$0xf]
  %v32 = vld [vmem:[%s1 + $0x2c] sm:$0xf]
  %v33 = vld [vmem:[%s1 + $0x30] sm:$0xf]
  %v34 = vld [vmem:[%s1 + $0x34] sm:$0xf]
  %v35 = vld [vmem:[%s1 + $0x38] sm:$0xf]
  %v36 = vld [vmem:[%s1 + $0x3c] sm:$0xf]
  %v37 = vld [vmem:[%s2] sm:$0xf]
  %v38 = vld [vmem:[%s2 + $0x4] sm:$0xf]
  %v39 = vld [vmem:[%s2 + $0x8] sm:$0xf]
  %v40 = vld [vmem:[%s2 + $0xc] sm:$0xf]
  %v41 = vld [vmem:[%s2 + $0x10] sm:$0xf]
  %v42 = vld [vmem:[%s2 + $0x14] sm:$0xf]
  %v43 = vld [vmem:[%s2 + $0x18] sm:$0xf]
  %v44 = vld [vmem:[%s2 + $0x1c] sm:$0xf]
  %v45 = vld [vmem:[%s2 + $0x20] sm:$0xf]
  %v46 = vld [vmem:[%s2 + $0x24] sm:$0xf]
  %v47 = vld [vmem:[%s2 + $0x28] sm:$0xf]
  %v48 = vld [vmem:[%s2 + $0x2c] sm:$0xf]
  %v49 = vld [vmem:[%s2 + $0x30] sm:$0xf]
  %v50 = vld [vmem:[%s2 + $0x34] sm:$0xf]
  %v51 = vld [vmem:[%s2 + $0x38] sm:$0xf]
  %v52 = vld [vmem:[%s2 + $0x3c] sm:$0xf]
  %v69 = vunpack.c.l.b16 %v21
  %v70 = vunpack.c.l.b16 %v22
  %v71 = vunpack.c.l.b16 %v23
  %v72 = vunpack.c.l.b16 %v24
  %v73 = vunpack.c.l.b16 %v25
  %v74 = vunpack.c.l.b16 %v26
  %v75 = vunpack.c.l.b16 %v27
  %v76 = vunpack.c.l.b16 %v28
  %v77 = vunpack.c.l.b16 %v29
  %v78 = vunpack.c.l.b16 %v30
  %v79 = vunpack.c.l.b16 %v31
  %v80 = vunpack.c.l.b16 %v32
  %v81 = vunpack.c.l.b16 %v33
  %v82 = vunpack.c.l.b16 %v34
  %v83 = vunpack.c.l.b16 %v35
  %v84 = vunpack.c.l.b16 %v36
  %v85 = vpack.c.b16 %v70, %v69
  %v86 = vpack.c.b16 %v72, %v71
  %v87 = vpack.c.b16 %v74, %v73
  %v88 = vpack.c.b16 %v76, %v75
  %v89 = vpack.c.b16 %v78, %v77
  %v90 = vpack.c.b16 %v80, %v79
  %v91 = vpack.c.b16 %v82, %v81
  %v92 = vpack.c.b16 %v84, %v83
  %v117 = vunpack.c.l.b16 %v37
  %v118 = vunpack.c.l.b16 %v38
  %v119 = vunpack.c.l.b16 %v39
  %v120 = vunpack.c.l.b16 %v40
  %v121 = vunpack.c.l.b16 %v41
  %v122 = vunpack.c.l.b16 %v42
  %v123 = vunpack.c.l.b16 %v43
  %v124 = vunpack.c.l.b16 %v44
  %v125 = vunpack.c.l.b16 %v45
  %v126 = vunpack.c.l.b16 %v46
  %v127 = vunpack.c.l.b16 %v47
  %v128 = vunpack.c.l.b16 %v48
  %v129 = vunpack.c.l.b16 %v49
  %v130 = vunpack.c.l.b16 %v50
  %v131 = vunpack.c.l.b16 %v51
  %v132 = vunpack.c.l.b16 %v52
  %v133 = vpack.c.b16 %v118, %v117
  %v134 = vpack.c.b16 %v120, %v119
  %v135 = vpack.c.b16 %v122, %v121
  %v136 = vpack.c.b16 %v124, %v123
  %v137 = vpack.c.b16 %v126, %v125
  %v138 = vpack.c.b16 %v128, %v127
  %v139 = vpack.c.b16 %v130, %v129
  %v140 = vpack.c.b16 %v132, %v131
  %149 = vmatprep.subr.bf16.mxu0 0
  %150 = vmatpush1.bf16.msra.mxu0 %v140
  %151 = vmatprep.subr.bf16.mxu0 0
  %152 = vmatpush1.bf16.msra.mxu0 %v139
  %153 = vmatprep.subr.bf16.mxu0 0
  %154 = vmatpush1.bf16.msra.mxu0 %v138
  %155 = vmatprep.subr.bf16.mxu0 0
  %156 = vmatpush1.bf16.msra.mxu0 %v137
  %157 = vmatprep.subr.bf16.mxu0 0
  %158 = vmatpush1.bf16.msra.mxu0 %v136
  %159 = vmatprep.subr.bf16.mxu0 0
  %160 = vmatpush1.bf16.msra.mxu0 %v135
  %161 = vmatprep.subr.bf16.mxu0 0
  %162 = vmatpush1.bf16.msra.mxu0 %v134
  %163 = vmatprep.subr.bf16.mxu0 0
  %164 = vmatpush1.bf16.msra.mxu0 %v133
  %165 = vmatprep.subr.bf16.mxu0 0
  %166 = vmatpush2.bf16.msra.mxu0 0
  %167 = vmatprep.subr.bf16.mxu0 0
  %168 = vmatpush2.bf16.msra.mxu0 0
  %169 = vmatprep.subr.bf16.mxu0 0
  %170 = vmatpush2.bf16.msra.mxu0 0
  %171 = vmatprep.subr.bf16.mxu0 0
  %172 = vmatpush2.bf16.msra.mxu0 0
  %173 = vmatprep.subr.bf16.mxu0 0
  %174 = vmatpush2.bf16.msra.mxu0 0
  %175 = vmatprep.subr.bf16.mxu0 0
  %176 = vmatpush2.bf16.msra.mxu0 0
  %177 = vmatprep.subr.bf16.mxu0 0
  %178 = vmatpush2.bf16.msra.mxu0 0
  %179 = vmatprep.subr.bf16.mxu0 0
  %180 = vmatpush2.bf16.msra.mxu0 0
  %181 = vmatprep.mubr.bf16.mxu0 0
  %182 = vmatmul.mubr.bf16.gmra.mxu0 %v85
  %v183 = vpop.f32.mrf.mxu0
  %v184 = vadd.f32 0.0, %v183
  %v185 = vpop.f32.mrf.mxu0
  %v186 = vpop.f32.mrf.mxu0
  %v187 = vadd.f32 0.0, %v186
  %v188 = vpop.f32.mrf.mxu0
  %189 = vmatprep.mubr.bf16.mxu0 0
  %190 = vmatmul.mubr.bf16.gmra.mxu0 %v86
  %v191 = vpop.f32.mrf.mxu0
  %v192 = vadd.f32 0.0, %v191
  %v193 = vpop.f32.mrf.mxu0
  %v194 = vpop.f32.mrf.mxu0
  %v195 = vadd.f32 0.0, %v194
  %v196 = vpop.f32.mrf.mxu0
  %197 = vmatprep.mubr.bf16.mxu0 0
  %198 = vmatmul.mubr.bf16.gmra.mxu0 %v87
  %v199 = vpop.f32.mrf.mxu0
  %v200 = vadd.f32 0.0, %v199
  %v201 = vpop.f32.mrf.mxu0
  %v202 = vpop.f32.mrf.mxu0
  %v203 = vadd.f32 0.0, %v202
  %v204 = vpop.f32.mrf.mxu0
  %205 = vmatprep.mubr.bf16.mxu0 0
  %206 = vmatmul.mubr.bf16.gmra.mxu0 %v88
  %v207 = vpop.f32.mrf.mxu0
  %v208 = vadd.f32 0.0, %v207
  %v209 = vpop.f32.mrf.mxu0
  %v210 = vpop.f32.mrf.mxu0
  %v211 = vadd.f32 0.0, %v210
  %v212 = vpop.f32.mrf.mxu0
  %213 = vmatprep.mubr.bf16.mxu0 0
  %214 = vmatmul.mubr.bf16.gmra.mxu0 %v89
  %v215 = vpop.f32.mrf.mxu0
  %v216 = vadd.f32 0.0, %v215
  %v217 = vpop.f32.mrf.mxu0
  %v218 = vpop.f32.mrf.mxu0
  %v219 = vadd.f32 0.0, %v218
  %v220 = vpop.f32.mrf.mxu0
  %221 = vmatprep.mubr.bf16.mxu0 0
  %222 = vmatmul.mubr.bf16.gmra.mxu0 %v90
  %v223 = vpop.f32.mrf.mxu0
  %v224 = vadd.f32 0.0, %v223
  %v225 = vpop.f32.mrf.mxu0
  %v226 = vpop.f32.mrf.mxu0
  %v227 = vadd.f32 0.0, %v226
  %v228 = vpop.f32.mrf.mxu0
  %229 = vmatprep.mubr.bf16.mxu0 0
  %230 = vmatmul.mubr.bf16.gmra.mxu0 %v91
  %v231 = vpop.f32.mrf.mxu0
  %v232 = vadd.f32 0.0, %v231
  %v233 = vpop.f32.mrf.mxu0
  %v234 = vpop.f32.mrf.mxu0
  %v235 = vadd.f32 0.0, %v234
  %v236 = vpop.f32.mrf.mxu0
  %237 = vmatprep.mubr.bf16.mxu0 0
  %238 = vmatmul.mubr.bf16.gmra.mxu0 %v92
  %v239 = vpop.f32.mrf.mxu0
  %v240 = vadd.f32 0.0, %v239
  %v241 = vpop.f32.mrf.mxu0
  %v242 = vpop.f32.mrf.mxu0
  %v243 = vadd.f32 0.0, %v242
  %v244 = vpop.f32.mrf.mxu0
  %245 = vdwg.mxu0
  %v246 = vld [vmem:[%s0] sm:$0xff]
  %v247 = vld [vmem:[%s0 + $0x8] sm:$0xff]
  %v248 = vld [vmem:[%s0 + $0x10] sm:$0xff]
  %v249 = vld [vmem:[%s0 + $0x18] sm:$0xff]
  %v250 = vld [vmem:[%s0 + $0x20] sm:$0xff]
  %v251 = vld [vmem:[%s0 + $0x28] sm:$0xff]
  %v252 = vld [vmem:[%s0 + $0x30] sm:$0xff]
  %v253 = vld [vmem:[%s0 + $0x38] sm:$0xff]
  %v254 = vld [vmem:[%s0 + $0x40] sm:$0xff]
  %v255 = vld [vmem:[%s0 + $0x48] sm:$0xff]
  %v256 = vld [vmem:[%s0 + $0x50] sm:$0xff]
  %v257 = vld [vmem:[%s0 + $0x58] sm:$0xff]
  %v258 = vld [vmem:[%s0 + $0x60] sm:$0xff]
  %v259 = vld [vmem:[%s0 + $0x68] sm:$0xff]
  %v260 = vld [vmem:[%s0 + $0x70] sm:$0xff]
  %v261 = vld [vmem:[%s0 + $0x78] sm:$0xff]
  %v262 = vld [vmem:[%s3] sm:$0x1]
  %v264 = vlaneseq
  %v265 = vshrl.u32 %v264, 7
  %v266 = vsub.s32 0, %v265
  %v267 = vrot.slane %v262, %v266
  %v269 = vmul.f32 %v246, %v267
  %v270 = vmul.f32 %v247, %v267
  %v271 = vmul.f32 %v248, %v267
  %v272 = vmul.f32 %v249, %v267
  %v273 = vmul.f32 %v250, %v267
  %v274 = vmul.f32 %v251, %v267
  %v275 = vmul.f32 %v252, %v267
  %v276 = vmul.f32 %v253, %v267
  %v277 = vmul.f32 %v254, %v267
  %v278 = vmul.f32 %v255, %v267
  %v279 = vmul.f32 %v256, %v267
  %v280 = vmul.f32 %v257, %v267
  %v281 = vmul.f32 %v258, %v267
  %v282 = vmul.f32 %v259, %v267
  %v283 = vmul.f32 %v260, %v267
  %v284 = vmul.f32 %v261, %v267
  %v285 = vld [vmem:[%s4] sm:$0x1]
  %v287 = vlaneseq
  %v288 = vshrl.u32 %v287, 7
  %v289 = vsub.s32 0, %v288
  %v290 = vrot.slane %v285, %v289
  %v292 = vadd.f32 %v269, %v290
  %v293 = vadd.f32 %v270, %v290
  %v294 = vadd.f32 %v271, %v290
  %v295 = vadd.f32 %v272, %v290
  %v296 = vadd.f32 %v273, %v290
  %v297 = vadd.f32 %v274, %v290
  %v298 = vadd.f32 %v275, %v290
  %v299 = vadd.f32 %v276, %v290
  %v300 = vadd.f32 %v277, %v290
  %v301 = vadd.f32 %v278, %v290
  %v302 = vadd.f32 %v279, %v290
  %v303 = vadd.f32 %v280, %v290
  %v304 = vadd.f32 %v281, %v290
  %v305 = vadd.f32 %v282, %v290
  %v306 = vadd.f32 %v283, %v290
  %v307 = vadd.f32 %v284, %v290
  %v308 = vadd.f32 %v292, %v184
  %v309 = vadd.f32 %v293, %v187
  %v310 = vadd.f32 %v294, %v192
  %v311 = vadd.f32 %v295, %v195
  %v312 = vadd.f32 %v296, %v200
  %v313 = vadd.f32 %v297, %v203
  %v314 = vadd.f32 %v298, %v208
  %v315 = vadd.f32 %v299, %v211
  %v316 = vadd.f32 %v300, %v216
  %v317 = vadd.f32 %v301, %v219
  %v318 = vadd.f32 %v302, %v224
  %v319 = vadd.f32 %v303, %v227
  %v320 = vadd.f32 %v304, %v232
  %v321 = vadd.f32 %v305, %v235
  %v322 = vadd.f32 %v306, %v240
  %v323 = vadd.f32 %v307, %v243
  %v324 = vmax.f32 %v308, 0.0
  %v325 = vmax.f32 %v309, 0.0
  %v326 = vmax.f32 %v310, 0.0
  %v327 = vmax.f32 %v311, 0.0
  %v328 = vmax.f32 %v312, 0.0
  %v329 = vmax.f32 %v313, 0.0
  %v330 = vmax.f32 %v314, 0.0
  %v331 = vmax.f32 %v315, 0.0
  %v332 = vmax.f32 %v316, 0.0
  %v333 = vmax.f32 %v317, 0.0
  %v334 = vmax.f32 %v318, 0.0
  %v335 = vmax.f32 %v319, 0.0
  %v336 = vmax.f32 %v320, 0.0
  %v337 = vmax.f32 %v321, 0.0
  %v338 = vmax.f32 %v322, 0.0
  %v339 = vmax.f32 %v323, 0.0
  %340 = vst [vmem:[%s5] sm:$0xff] %v324
  %341 = vst [vmem:[%s5 + $0x8] sm:$0xff] %v325
  %342 = vst [vmem:[%s5 + $0x10] sm:$0xff] %v326
  %343 = vst [vmem:[%s5 + $0x18] sm:$0xff] %v327
  %344 = vst [vmem:[%s5 + $0x20] sm:$0xff] %v328
  %345 = vst [vmem:[%s5 + $0x28] sm:$0xff] %v329
  %346 = vst [vmem:[%s5 + $0x30] sm:$0xff] %v330
  %347 = vst [vmem:[%s5 + $0x38] sm:$0xff] %v331
  %348 = vst [vmem:[%s5 + $0x40] sm:$0xff] %v332
  %349 = vst [vmem:[%s5 + $0x48] sm:$0xff] %v333
  %350 = vst [vmem:[%s5 + $0x50] sm:$0xff] %v334
  %351 = vst [vmem:[%s5 + $0x58] sm:$0xff] %v335
  %352 = vst [vmem:[%s5 + $0x60] sm:$0xff] %v336
  %353 = vst [vmem:[%s5 + $0x68] sm:$0xff] %v337
  %354 = vst [vmem:[%s5 + $0x70] sm:$0xff] %v338
  %355 = vst [vmem:[%s5 + $0x78] sm:$0xff] %v339
  // Predicated region
  $region22: #{basicneck_forward.7} parent=0 // pred_check
    _
  $region23: #{basicneck_forward.7} parent=0 // pred_check_branch
    %357 = sbr.rel (0) target = $region25
  $region24: #{basicneck_forward.7} parent=0 // pred_region
    _
  $region25: #{basicneck_forward.7} parent=0 // pred_fallthru
    _
  // Predicated region
  $region26: #{basicneck_forward.7} parent=0 // pred_check
    _
  $region27: #{basicneck_forward.7} parent=0 // pred_check_branch
    %359 = sbr.rel (0) target = $region29
  $region28: #{basicneck_forward.7} parent=0 // pred_region
    _
  $region29: #{basicneck_forward.7} parent=0 // pred_fallthru
    _

</llo_original>
